<compile_context>
chip_gen: v7x
topology: tpu7x:2x2x1
jax: 0.10.0
libtpu: 0.0.40
codegen_flags: <defaults>
</compile_context>

<pallas_src>
import functools
import math

import jax
import jax.numpy as jnp
from jax import lax
from jax.experimental import pallas as pl
from jax.experimental.pallas import tpu as pltpu

EVAL_CAPACITY_TOKEN_FRACTION = 0.25
SAMPLE_FRACTION = 0.2


def _round_up(x: int, m: int) -> int:
    return ((x + m - 1) // m) * m


def _top1gate_kernel(x_ref, w_ref,
                     tok_ref, laux_ref, ent_ref, cnt_ref,
                     offset_acc, me_acc, ent_acc, tri_ref,
                     *, capacity: int, num_tokens: int):
    """One token-tile per grid step; reductions + cumsum offsets carried in VMEM."""
    i = pl.program_id(0)
    n_tiles = pl.num_programs(0)

    TS = x_ref.shape[0]
    E = w_ref.shape[0]
    W = tok_ref.shape[1]          # round_up(E + 2, 128)

    @pl.when(i == 0)
    def _init():
        offset_acc[...] = jnp.zeros_like(offset_acc)
        me_acc[...] = jnp.zeros_like(me_acc)
        ent_acc[...] = jnp.zeros_like(ent_acc)
        # Loop-invariant lower-triangular (incl. diagonal) matrix, built once.
        r = lax.broadcasted_iota(jnp.int32, (TS, TS), 0)
        c = lax.broadcasted_iota(jnp.int32, (TS, TS), 1)
        tri_ref[...] = (r >= c).astype(jnp.bfloat16)

    x = x_ref[...]                                   # (TS, D) bf16
    w = w_ref[...]                                   # (E, D)  bf16

    # Validity mask for rows beyond the true token count (wrapper zero-pads S).
    row_ids = lax.broadcasted_iota(jnp.int32, (TS, 1), 0) + i * TS
    valid = (row_ids < num_tokens).astype(jnp.float32)             # (TS, 1)

    # ---- logits = wg(input): bf16 operands, f32 accumulation, contract on D ----
    logits = lax.dot_general(x, w, (((1,), (1,)), ((), ())),
                             preferred_element_type=jnp.float32)   # (TS, E)

    # ---- softmax / log-softmax in f32 ----
    m = jnp.max(logits, axis=1, keepdims=True)
    z = logits - m
    ex = jnp.exp(z)
    denom = jnp.sum(ex, axis=1, keepdims=True)
    gates = ex / denom                                             # (TS, E)
    logp = z - jnp.log(denom)

    # entropy_gating accumulation (valid rows only); -sum p*log p, NaN-free.
    ent_rows = -jnp.sum(gates * logp, axis=1, keepdims=True)       # (TS, 1)
    ent_acc[...] += jnp.sum(ent_rows * valid, axis=0, keepdims=True)

    # ---- top-1 expert: argmax on logits, first-occurrence tie-break ----
    e_iota = lax.broadcasted_iota(jnp.int32, (TS, E), 1)
    idx = jnp.min(jnp.where(logits == m, e_iota, E), axis=1, keepdims=True)
    mask1 = (e_iota == idx).astype(jnp.float32) * valid            # (TS, E)

    # ---- running reductions (pre-capacity, matching the reference) ----
    me_acc[...] += jnp.sum(gates * valid, axis=0, keepdims=True)   # sum of gates
    tile_counts = jnp.sum(mask1, axis=0, keepdims=True)            # (1, E)
    offset_prev = offset_acc[...]                                  # pre-tile cumsum offsets
    offset_acc[...] = offset_prev + tile_counts

    # gate value of the selected expert
    gates1_s = jnp.sum(gates * mask1, axis=1, keepdims=True)       # (TS, 1)

    # ---- blocked token cumsum: (TS,TS) tri matmul (bf16 0/1 operands, exact) ----
    locations1 = jnp.dot(tri_ref[...], mask1.astype(jnp.bfloat16),
                         preferred_element_type=jnp.float32)       # (TS, E)
    locations1 = locations1 + offset_prev - 1.0

    # ---- capacity mask ----
    keep = (locations1 < float(capacity)).astype(jnp.float32)
    mask1 = mask1 * keep                                           # post-capacity
    locations1_s = jnp.sum(locations1 * mask1, axis=1, keepdims=True)  # (TS, 1)

    # ---- one lane-dense (TS, W) per-token output block ----
    # layout: [0:E] post-capacity mask1 | [E] slot index | [E+1] gate value.
    tok_ref[...] = jnp.zeros((TS, W), jnp.float32)
    tok_ref[:, :E] = mask1
    tok_ref[:, E:E + 1] = locations1_s
    tok_ref[:, E + 1:E + 2] = gates1_s

    # ---- finalize scalar/vector reductions on the last tile ----
    @pl.when(i == n_tiles - 1)
    def _fin():
        counts = offset_acc[...]                                   # (1, E), pre-capacity
        inv_s = 1.0 / float(num_tokens)
        me = me_acc[...] * inv_s
        ce = counts * inv_s
        # mean(me*ce) * E*E == sum(me*ce) * E
        laux_ref[...] = jnp.sum(me * ce, axis=1, keepdims=True) * float(E)
        ent_ref[...] = ent_acc[...] * inv_s
        cnt_ref[...] = counts


def top1gate_forward(x, wg_weight, *, capacity_factor=1.0, eval_mode=False,
                     moe_eval_capacity_token_fraction=EVAL_CAPACITY_TOKEN_FRACTION,
                     tile_tokens=512):
    """JAX/Pallas equivalent of Top1Gate.forward(input)."""
    S, D = x.shape
    E = wg_weight.shape[0]

    if eval_mode and moe_eval_capacity_token_fraction > 0.0:
        capacity = int(math.ceil(moe_eval_capacity_token_fraction * S))
    else:
        capacity = int(capacity_factor * math.ceil(S / E))
    C = max(capacity, 1)

    # Token tile: multiple of 8 (sublane).  Per-tile VMEM footprint is only
    # O(TS*D bf16 + TS*TS bf16 + TS*W f32), so large tiles (512) are safe on
    # all generations and amortise per-grid-step overhead.
    TS = _round_up(min(tile_tokens, max(S, 8)), 8)
    S_pad = _round_up(S, TS)
    num_tiles = S_pad // TS
    W = _round_up(E + 2, 128)     # merged lane-dense per-token output width

    # bf16 MXU operands (f32 accumulation in-kernel); halves x input DMA.
    # NOTE: logits are computed at bf16 input precision; near-tied experts may
    # route differently than an f32 reference.
    x_p = x.astype(jnp.bfloat16)
    if S_pad != S:
        x_p = jnp.pad(x_p, ((0, S_pad - S), (0, 0)))
    w_ed = wg_weight.astype(jnp.bfloat16)            # (E, D), no transpose

    tok, laux, ent, counts = pl.pallas_call(
        functools.partial(_top1gate_kernel, capacity=C, num_tokens=S),
        grid=(num_tiles,),
        out_shape=(
            jax.ShapeDtypeStruct((S_pad, W), jnp.float32),   # merged per-token state
            jax.ShapeDtypeStruct((1, 1), jnp.float32),       # l_aux
            jax.ShapeDtypeStruct((1, 1), jnp.float32),       # entropy_gating
            jax.ShapeDtypeStruct((1, E), jnp.float32),       # per-expert counts
        ),
        in_specs=[
            pl.BlockSpec((TS, D), lambda i: (i, 0)),
            pl.BlockSpec((E, D), lambda i: (0, 0)),
        ],
        out_specs=(
            pl.BlockSpec((TS, W), lambda i: (i, 0)),
            pl.BlockSpec((1, 1), lambda i: (0, 0)),
            pl.BlockSpec((1, 1), lambda i: (0, 0)),
            pl.BlockSpec((1, E), lambda i: (0, 0)),
        ),
        scratch_shapes=[
            pltpu.VMEM((1, E), jnp.float32),     # running per-expert counts / cumsum offset
            pltpu.VMEM((1, E), jnp.float32),     # running sum of gates (me numerator)
            pltpu.VMEM((1, 1), jnp.float32),     # running entropy sum
            pltpu.VMEM((TS, TS), jnp.bfloat16),  # loop-invariant triangular matrix
        ],
        compiler_params=pltpu.CompilerParams(
            dimension_semantics=("arbitrary",),   # sequential: carries the token cumsum
            vmem_limit_bytes=48 * 1024 * 1024),   # headroom on v7x's 64 MiB physical VMEM
    )(x_p, w_ed)

    # ---- split the merged per-token block (wrapper side) ----
    tok = tok[:S]
    mask1 = tok[:, :E]                         # post-capacity one-hot (f32 0/1)
    loc_s = tok[:, E].astype(jnp.int32)        # slot index per token
    gates1_s = tok[:, E + 1]                   # gate value of selected expert

    # ---- combine1_sec / dispatch_mask built from O(S*E) tensors ----
    gates1 = gates1_s[:, None] * mask1                                   # (S, E)
    slot_onehot = (loc_s[:, None] == jnp.arange(C, dtype=jnp.int32)
                   ).astype(jnp.float32)                                 # (S, C)
    combine1_sec = gates1[:, :, None] * slot_onehot[:, None, :]          # (S, E, C)
    dispatch_mask = combine1_sec.astype(bool)

    # --- metadata glue (histc/sort have no clean in-kernel equivalent) ---
    counts1 = counts[0]                                                  # (E,), pre-capacity
    expert1_hist = 100.0 * counts1 / S
    unused_expert1_count = jnp.sum(expert1_hist == 0.0)
    tiny = jnp.finfo(jnp.float32).tiny
    hist_sorted = jnp.sort(expert1_hist)[::-1] + tiny                    # descending
    sample_count = max(math.ceil(E * SAMPLE_FRACTION), 1)
    metadata = {
        "entropy_gating": ent[0, 0],
        "unused_expert1_count": unused_expert1_count,
        "expert1_balance_top": jnp.sum(hist_sorted[:sample_count]),
        "expert1_balance_bottom": jnp.sum(hist_sorted[-sample_count:]),
    }
    return laux[0, 0], combine1_sec, dispatch_mask, metadata


if __name__ == "__main__":
    key = jax.random.PRNGKey(0)
    k_x, k_w = jax.random.split(key)

    num_tokens, model_dim, num_experts = 16, 32, 4

    x = jax.random.normal(k_x, (num_tokens, model_dim), dtype=jnp.float32)
    # Deterministic init mimicking torch.nn.Linear default (uniform +-1/sqrt(D)).
    bound = 1.0 / math.sqrt(model_dim)
    wg_weight = jax.random.uniform(
        k_w, (num_experts, model_dim), minval=-bound, maxval=bound,
        dtype=jnp.float32)

    # tile_tokens=8 -> exercises the multi-tile (carried cumsum) path at tiny shapes.
    l_aux, combine_weights, dispatch_mask, metadata = top1gate_forward(
        x, wg_weight, capacity_factor=1.0, tile_tokens=8)

    jax.block_until_ready(
        (l_aux, combine_weights, dispatch_mask, *metadata.values()))
    print("KERNEL_OK")
</pallas_src>

<mosaic_0001>
module attributes {stable_mosaic.version = 11 : i64} {
  func.func @_top1gate_kernel(%arg0: i32, %arg1: memref<8x32xbf16, #tpu.memory_space<vmem>>, %arg2: memref<4x32xbf16, #tpu.memory_space<vmem>>, %arg3: memref<8x128xf32, #tpu.memory_space<vmem>>, %arg4: memref<1x1xf32, #tpu.memory_space<vmem>>, %arg5: memref<1x1xf32, #tpu.memory_space<vmem>>, %arg6: memref<1x4xf32, #tpu.memory_space<vmem>>, %arg7: memref<1x4xf32, #tpu.memory_space<vmem>>, %arg8: memref<1x4xf32, #tpu.memory_space<vmem>>, %arg9: memref<1x1xf32, #tpu.memory_space<vmem>>, %arg10: memref<8x8xbf16, #tpu.memory_space<vmem>>) attributes {dimension_semantics = [#tpu.dimension_semantics<arbitrary>], iteration_bounds = array<i64: 2>, scalar_prefetch = 0 : i64, scratch_operands = 4 : i64, tpu.core_type = #tpu.core_type<tc>, window_params = [{transform_indices = @transform_0, window_bounds = array<i64: 8, 32>}, {pipeline_mode = #tpu.pipeline_mode<synchronous>, transform_indices = @transform_1, window_bounds = array<i64: 4, 32>}, {transform_indices = @transform_2, window_bounds = array<i64: 8, 128>}, {pipeline_mode = #tpu.pipeline_mode<synchronous>, transform_indices = @transform_3, window_bounds = array<i64: 1, 1>}, {pipeline_mode = #tpu.pipeline_mode<synchronous>, transform_indices = @transform_4, window_bounds = array<i64: 1, 1>}, {pipeline_mode = #tpu.pipeline_mode<synchronous>, transform_indices = @transform_5, window_bounds = array<i64: 1, 4>}]} {
    %c0_i32 = arith.constant 0 : i32
    %0 = arith.cmpi eq, %arg0, %c0_i32 : i32
    %1 = arith.extui %0 : i1 to i32
    %c0_i32_0 = arith.constant 0 : i32
    %2 = arith.cmpi ne, %1, %c0_i32_0 : i32
    scf.if %2 {
      %cst_39 = arith.constant 0.000000e+00 : f32
      %88 = vector.broadcast %cst_39 : f32 to vector<1x4xf32>
      %c0_40 = arith.constant 0 : index
      %c0_41 = arith.constant 0 : index
      %89 = vector.load %arg7[%c0_40, %c0_41] : memref<1x4xf32, #tpu.memory_space<vmem>>, vector<1x4xf32>
      tpu.vector_store %arg7[%c0_40, %c0_41], %88 {strides = array<i32>} : memref<1x4xf32, #tpu.memory_space<vmem>>, vector<1x4xf32>,
      %cst_42 = arith.constant 0.000000e+00 : f32
      %90 = vector.broadcast %cst_42 : f32 to vector<1x4xf32>
      %c0_43 = arith.constant 0 : index
      %c0_44 = arith.constant 0 : index
      %91 = vector.load %arg8[%c0_43, %c0_44] : memref<1x4xf32, #tpu.memory_space<vmem>>, vector<1x4xf32>
      tpu.vector_store %arg8[%c0_43, %c0_44], %90 {strides = array<i32>} : memref<1x4xf32, #tpu.memory_space<vmem>>, vector<1x4xf32>,
      %cst_45 = arith.constant 0.000000e+00 : f32
      %92 = vector.broadcast %cst_45 : f32 to vector<1x1xf32>
      %c0_46 = arith.constant 0 : index
      %c0_47 = arith.constant 0 : index
      %93 = vector.load %arg9[%c0_46, %c0_47] : memref<1x1xf32, #tpu.memory_space<vmem>>, vector<1x1xf32>
      tpu.vector_store %arg9[%c0_46, %c0_47], %92 {strides = array<i32>} : memref<1x1xf32, #tpu.memory_space<vmem>>, vector<1x1xf32>,
      %94 = tpu.iota {dimensions = array<i32: 0>} : vector<8x8xi32>
      %95 = tpu.iota {dimensions = array<i32: 1>} : vector<8x8xi32>
      %96 = arith.cmpi sge, %94, %95 : vector<8x8xi32>
      %97 = arith.extui %96 : vector<8x8xi1> to vector<8x8xi32>
      %98 = arith.sitofp %97 : vector<8x8xi32> to vector<8x8xf32>
      %99 = arith.truncf %98 : vector<8x8xf32> to vector<8x8xbf16>
      %c0_48 = arith.constant 0 : index
      %c0_49 = arith.constant 0 : index
      %100 = vector.load %arg10[%c0_48, %c0_49] : memref<8x8xbf16, #tpu.memory_space<vmem>>, vector<8x8xbf16>
      tpu.vector_store %arg10[%c0_48, %c0_49], %99 {strides = array<i32>} : memref<8x8xbf16, #tpu.memory_space<vmem>>, vector<8x8xbf16>,
    } else {
    }
    %c0 = arith.constant 0 : index
    %c0_1 = arith.constant 0 : index
    %3 = vector.load %arg1[%c0, %c0_1] : memref<8x32xbf16, #tpu.memory_space<vmem>>, vector<8x32xbf16>
    %c0_2 = arith.constant 0 : index
    %c0_3 = arith.constant 0 : index
    %4 = vector.load %arg2[%c0_2, %c0_3] : memref<4x32xbf16, #tpu.memory_space<vmem>>, vector<4x32xbf16>
    %5 = tpu.iota {dimensions = array<i32: 0>} : vector<8x1xi32>
    %c8_i32 = arith.constant 8 : i32
    %6 = arith.muli %arg0, %c8_i32 : i32
    %7 = vector.broadcast %6 : i32 to vector<8x1xi32>
    %8 = arith.addi %5, %7 : vector<8x1xi32>
    %c16_i32 = arith.constant 16 : i32
    %9 = vector.broadcast %c16_i32 : i32 to vector<8x1xi32>
    %10 = arith.cmpi slt, %8, %9 : vector<8x1xi32>
    %11 = arith.extui %10 : vector<8x1xi1> to vector<8x1xi32>
    %12 = arith.sitofp %11 : vector<8x1xi32> to vector<8x1xf32>
    %cst = arith.constant dense<0.000000e+00> : vector<8x4xf32>
    %13 = tpu.matmul %3, %4, %cst {dimension_numbers = #tpu.dot_dimension_numbers<[1], [1], [0], [0], [0, 0, 1, 0], [], []>} : vector<8x32xbf16>, vector<4x32xbf16>, vector<8x4xf32> -> vector<8x4xf32>
    %cst_4 = arith.constant dense<0xFF800000> : vector<8xf32>
    %14 = vector.multi_reduction <maximumf>, %13, %cst_4 [1] : vector<8x4xf32> to vector<8xf32>
    %15 = vector.shape_cast %14 : vector<8xf32> to vector<8x1xf32>
    %16 = vector.broadcast %15 : vector<8x1xf32> to vector<8x4xf32>
    %17 = arith.subf %13, %16 : vector<8x4xf32>
    %18 = math.exp %17 : vector<8x4xf32>
    %cst_5 = arith.constant dense<0.000000e+00> : vector<8xf32>
    %19 = vector.multi_reduction <add>, %18, %cst_5 [1] : vector<8x4xf32> to vector<8xf32>
    %20 = vector.shape_cast %19 : vector<8xf32> to vector<8x1xf32>
    %21 = vector.broadcast %20 : vector<8x1xf32> to vector<8x4xf32>
    %22 = arith.divf %18, %21 : vector<8x4xf32>
    %23 = math.log %20 : vector<8x1xf32>
    %24 = vector.broadcast %23 : vector<8x1xf32> to vector<8x4xf32>
    %25 = arith.subf %17, %24 : vector<8x4xf32>
    %26 = arith.mulf %22, %25 : vector<8x4xf32>
    %cst_6 = arith.constant dense<0.000000e+00> : vector<8xf32>
    %27 = vector.multi_reduction <add>, %26, %cst_6 [1] : vector<8x4xf32> to vector<8xf32>
    %28 = vector.shape_cast %27 : vector<8xf32> to vector<8x1xf32>
    %cst_7 = arith.constant 0.000000e+00 : f32
    %29 = vector.broadcast %cst_7 : f32 to vector<8x1xf32>
    %30 = arith.subf %29, %28 : vector<8x1xf32>
    %c0_8 = arith.constant 0 : index
    %c0_9 = arith.constant 0 : index
    %31 = vector.load %arg9[%c0_8, %c0_9] : memref<1x1xf32, #tpu.memory_space<vmem>>, vector<1x1xf32>
    %32 = arith.mulf %30, %12 : vector<8x1xf32>
    %cst_10 = arith.constant dense<0.000000e+00> : vector<1xf32>
    %33 = vector.multi_reduction <add>, %32, %cst_10 [0] : vector<8x1xf32> to vector<1xf32>
    %34 = vector.shape_cast %33 : vector<1xf32> to vector<1x1xf32>
    %35 = arith.addf %31, %34 : vector<1x1xf32>
    %c0_11 = arith.constant 0 : index
    %c0_12 = arith.constant 0 : index
    %36 = vector.load %arg9[%c0_11, %c0_12] : memref<1x1xf32, #tpu.memory_space<vmem>>, vector<1x1xf32>
    tpu.vector_store %arg9[%c0_11, %c0_12], %35 {strides = array<i32>} : memref<1x1xf32, #tpu.memory_space<vmem>>, vector<1x1xf32>,
    %37 = tpu.iota {dimensions = array<i32: 1>} : vector<8x4xi32>
    %38 = vector.broadcast %15 : vector<8x1xf32> to vector<8x4xf32>
    %39 = arith.cmpf oeq, %13, %38 : vector<8x4xf32>
    %c4_i32 = arith.constant 4 : i32
    %40 = vector.broadcast %c4_i32 : i32 to vector<8x4xi32>
    %41 = arith.select %39, %37, %40 : vector<8x4xi1>, vector<8x4xi32>
    %cst_13 = arith.constant dense<2147483647> : vector<8xi32>
    %42 = vector.multi_reduction <minsi>, %41, %cst_13 [1] : vector<8x4xi32> to vector<8xi32>
    %43 = vector.shape_cast %42 : vector<8xi32> to vector<8x1xi32>
    %44 = vector.broadcast %43 : vector<8x1xi32> to vector<8x4xi32>
    %45 = arith.cmpi eq, %37, %44 : vector<8x4xi32>
    %46 = arith.extui %45 : vector<8x4xi1> to vector<8x4xi32>
    %47 = arith.sitofp %46 : vector<8x4xi32> to vector<8x4xf32>
    %48 = vector.broadcast %12 : vector<8x1xf32> to vector<8x4xf32>
    %49 = arith.mulf %47, %48 : vector<8x4xf32>
    %c0_14 = arith.constant 0 : index
    %c0_15 = arith.constant 0 : index
    %50 = vector.load %arg8[%c0_14, %c0_15] : memref<1x4xf32, #tpu.memory_space<vmem>>, vector<1x4xf32>
    %51 = vector.broadcast %12 : vector<8x1xf32> to vector<8x4xf32>
    %52 = arith.mulf %22, %51 : vector<8x4xf32>
    %cst_16 = arith.constant dense<0.000000e+00> : vector<4xf32>
    %53 = vector.multi_reduction <add>, %52, %cst_16 [0] : vector<8x4xf32> to vector<4xf32>
    %54 = vector.shape_cast %53 : vector<4xf32> to vector<1x4xf32>
    %55 = arith.addf %50, %54 : vector<1x4xf32>
    %c0_17 = arith.constant 0 : index
    %c0_18 = arith.constant 0 : index
    %56 = vector.load %arg8[%c0_17, %c0_18] : memref<1x4xf32, #tpu.memory_space<vmem>>, vector<1x4xf32>
    tpu.vector_store %arg8[%c0_17, %c0_18], %55 {strides = array<i32>} : memref<1x4xf32, #tpu.memory_space<vmem>>, vector<1x4xf32>,
    %cst_19 = arith.constant dense<0.000000e+00> : vector<4xf32>
    %57 = vector.multi_reduction <add>, %49, %cst_19 [0] : vector<8x4xf32> to vector<4xf32>
    %58 = vector.shape_cast %57 : vector<4xf32> to vector<1x4xf32>
    %c0_20 = arith.constant 0 : index
    %c0_21 = arith.constant 0 : index
    %59 = vector.load %arg7[%c0_20, %c0_21] : memref<1x4xf32, #tpu.memory_space<vmem>>, vector<1x4xf32>
    %60 = arith.addf %59, %58 : vector<1x4xf32>
    %c0_22 = arith.constant 0 : index
    %c0_23 = arith.constant 0 : index
    %61 = vector.load %arg7[%c0_22, %c0_23] : memref<1x4xf32, #tpu.memory_space<vmem>>, vector<1x4xf32>
    tpu.vector_store %arg7[%c0_22, %c0_23], %60 {strides = array<i32>} : memref<1x4xf32, #tpu.memory_space<vmem>>, vector<1x4xf32>,
    %62 = arith.mulf %22, %49 : vector<8x4xf32>
    %cst_24 = arith.constant dense<0.000000e+00> : vector<8xf32>
    %63 = vector.multi_reduction <add>, %62, %cst_24 [1] : vector<8x4xf32> to vector<8xf32>
    %64 = vector.shape_cast %63 : vector<8xf32> to vector<8x1xf32>
    %c0_25 = arith.constant 0 : index
    %c0_26 = arith.constant 0 : index
    %65 = vector.load %arg10[%c0_25, %c0_26] : memref<8x8xbf16, #tpu.memory_space<vmem>>, vector<8x8xbf16>
    %66 = arith.truncf %49 : vector<8x4xf32> to vector<8x4xbf16>
    %cst_27 = arith.constant dense<0.000000e+00> : vector<8x4xf32>
    %67 = tpu.matmul %65, %66, %cst_27 {dimension_numbers = #tpu.dot_dimension_numbers<[1], [0], [0], [1], [0, 0, 1, 1], [], []>} : vector<8x8xbf16>, vector<8x4xbf16>, vector<8x4xf32> -> vector<8x4xf32>
    %68 = vector.broadcast %59 : vector<1x4xf32> to vector<8x4xf32>
    %69 = arith.addf %67, %68 : vector<8x4xf32>
    %cst_28 = arith.constant 1.000000e+00 : f32
    %70 = vector.broadcast %cst_28 : f32 to vector<8x4xf32>
    %71 = arith.subf %69, %70 : vector<8x4xf32>
    %cst_29 = arith.constant 4.000000e+00 : f32
    %72 = vector.broadcast %cst_29 : f32 to vector<8x4xf32>
    %73 = arith.cmpf olt, %71, %72 : vector<8x4xf32>
    %74 = arith.extui %73 : vector<8x4xi1> to vector<8x4xi32>
    %75 = arith.sitofp %74 : vector<8x4xi32> to vector<8x4xf32>
    %76 = arith.mulf %49, %75 : vector<8x4xf32>
    %77 = arith.mulf %71, %76 : vector<8x4xf32>
    %cst_30 = arith.constant dense<0.000000e+00> : vector<8xf32>
    %78 = vector.multi_reduction <add>, %77, %cst_30 [1] : vector<8x4xf32> to vector<8xf32>
    %79 = vector.shape_cast %78 : vector<8xf32> to vector<8x1xf32>
    %cst_31 = arith.constant 0.000000e+00 : f32
    %80 = vector.broadcast %cst_31 : f32 to vector<8x128xf32>
    %c0_32 = arith.constant 0 : index
    %c0_33 = arith.constant 0 : index
    %81 = vector.load %arg3[%c0_32, %c0_33] : memref<8x128xf32, #tpu.memory_space<vmem>>, vector<8x128xf32>
    tpu.vector_store %arg3[%c0_32, %c0_33], %80 {strides = array<i32>} : memref<8x128xf32, #tpu.memory_space<vmem>>, vector<8x128xf32>,
    %c0_34 = arith.constant 0 : index
    %c0_35 = arith.constant 0 : index
    %82 = vector.load %arg3[%c0_34, %c0_35] : memref<8x128xf32, #tpu.memory_space<vmem>>, vector<8x4xf32>
    tpu.vector_store %arg3[%c0_34, %c0_35], %76 {strides = array<i32>} : memref<8x128xf32, #tpu.memory_space<vmem>>, vector<8x4xf32>,
    %c0_36 = arith.constant 0 : index
    %c4 = arith.constant 4 : index
    %83 = vector.load %arg3[%c0_36, %c4] : memref<8x128xf32, #tpu.memory_space<vmem>>, vector<8x1xf32>
    tpu.vector_store %arg3[%c0_36, %c4], %79 {strides = array<i32>} : memref<8x128xf32, #tpu.memory_space<vmem>>, vector<8x1xf32>,
    %c0_37 = arith.constant 0 : index
    %c5 = arith.constant 5 : index
    %84 = vector.load %arg3[%c0_37, %c5] : memref<8x128xf32, #tpu.memory_space<vmem>>, vector<8x1xf32>
    tpu.vector_store %arg3[%c0_37, %c5], %64 {strides = array<i32>} : memref<8x128xf32, #tpu.memory_space<vmem>>, vector<8x1xf32>,
    %c1_i32 = arith.constant 1 : i32
    %85 = arith.cmpi eq, %arg0, %c1_i32 : i32
    %86 = arith.extui %85 : i1 to i32
    %c0_i32_38 = arith.constant 0 : i32
    %87 = arith.cmpi ne, %86, %c0_i32_38 : i32
    scf.if %87 {
      %c0_39 = arith.constant 0 : index
      %c0_40 = arith.constant 0 : index
      %88 = vector.load %arg7[%c0_39, %c0_40] : memref<1x4xf32, #tpu.memory_space<vmem>>, vector<1x4xf32>
      %c0_41 = arith.constant 0 : index
      %c0_42 = arith.constant 0 : index
      %89 = vector.load %arg8[%c0_41, %c0_42] : memref<1x4xf32, #tpu.memory_space<vmem>>, vector<1x4xf32>
      %cst_43 = arith.constant 6.250000e-02 : f32
      %90 = vector.broadcast %cst_43 : f32 to vector<1x4xf32>
      %91 = arith.mulf %89, %90 : vector<1x4xf32>
      %cst_44 = arith.constant 6.250000e-02 : f32
      %92 = vector.broadcast %cst_44 : f32 to vector<1x4xf32>
      %93 = arith.mulf %88, %92 : vector<1x4xf32>
      %94 = arith.mulf %91, %93 : vector<1x4xf32>
      %cst_45 = arith.constant dense<0.000000e+00> : vector<1xf32>
      %95 = vector.multi_reduction <add>, %94, %cst_45 [1] : vector<1x4xf32> to vector<1xf32>
      %96 = vector.shape_cast %95 : vector<1xf32> to vector<1x1xf32>
      %cst_46 = arith.constant 4.000000e+00 : f32
      %97 = vector.broadcast %cst_46 : f32 to vector<1x1xf32>
      %98 = arith.mulf %96, %97 : vector<1x1xf32>
      %c0_47 = arith.constant 0 : index
      %c0_48 = arith.constant 0 : index
      %99 = vector.load %arg4[%c0_47, %c0_48] : memref<1x1xf32, #tpu.memory_space<vmem>>, vector<1x1xf32>
      tpu.vector_store %arg4[%c0_47, %c0_48], %98 {strides = array<i32>} : memref<1x1xf32, #tpu.memory_space<vmem>>, vector<1x1xf32>,
      %c0_49 = arith.constant 0 : index
      %c0_50 = arith.constant 0 : index
      %100 = vector.load %arg9[%c0_49, %c0_50] : memref<1x1xf32, #tpu.memory_space<vmem>>, vector<1x1xf32>
      %cst_51 = arith.constant 6.250000e-02 : f32
      %101 = vector.broadcast %cst_51 : f32 to vector<1x1xf32>
      %102 = arith.mulf %100, %101 : vector<1x1xf32>
      %c0_52 = arith.constant 0 : index
      %c0_53 = arith.constant 0 : index
      %103 = vector.load %arg5[%c0_52, %c0_53] : memref<1x1xf32, #tpu.memory_space<vmem>>, vector<1x1xf32>
      tpu.vector_store %arg5[%c0_52, %c0_53], %102 {strides = array<i32>} : memref<1x1xf32, #tpu.memory_space<vmem>>, vector<1x1xf32>,
      %c0_54 = arith.constant 0 : index
      %c0_55 = arith.constant 0 : index
      %104 = vector.load %arg6[%c0_54, %c0_55] : memref<1x4xf32, #tpu.memory_space<vmem>>, vector<1x4xf32>
      tpu.vector_store %arg6[%c0_54, %c0_55], %88 {strides = array<i32>} : memref<1x4xf32, #tpu.memory_space<vmem>>, vector<1x4xf32>,
    } else {
    }
    return
  }
  func.func @transform_0(%arg0: i32) -> (i32, i32) {
    %c0_i32 = arith.constant 0 : i32
    %c0_i32_0 = arith.constant 0 : i32
    return %arg0, %c0_i32 : i32, i32
  }
  func.func @transform_1(%arg0: i32) -> (i32, i32) {
    %c0_i32 = arith.constant 0 : i32
    %c0_i32_0 = arith.constant 0 : i32
    %c0_i32_1 = arith.constant 0 : i32
    return %c0_i32, %c0_i32_0 : i32, i32
  }
  func.func @transform_2(%arg0: i32) -> (i32, i32) {
    %c0_i32 = arith.constant 0 : i32
    %c0_i32_0 = arith.constant 0 : i32
    return %arg0, %c0_i32 : i32, i32
  }
  func.func @transform_3(%arg0: i32) -> (i32, i32) {
    %c0_i32 = arith.constant 0 : i32
    %c0_i32_0 = arith.constant 0 : i32
    %c0_i32_1 = arith.constant 0 : i32
    return %c0_i32, %c0_i32_0 : i32, i32
  }
  func.func @transform_4(%arg0: i32) -> (i32, i32) {
    %c0_i32 = arith.constant 0 : i32
    %c0_i32_0 = arith.constant 0 : i32
    %c0_i32_1 = arith.constant 0 : i32
    return %c0_i32, %c0_i32_0 : i32, i32
  }
  func.func @transform_5(%arg0: i32) -> (i32, i32) {
    %c0_i32 = arith.constant 0 : i32
    %c0_i32_0 = arith.constant 0 : i32
    %c0_i32_1 = arith.constant 0 : i32
    return %c0_i32, %c0_i32_0 : i32, i32
  }
}

</mosaic_0001>

<llo_original>
// kernel: tpu_custom_call.1
$region0: #{tpu_custom_call.1}
  #allocation0 [shape = 'u32[]', space=smem, size = 0x4, offset = 0x4, fixed_abs, tag = 'smem constant byte address 0x4 - core index']
  #allocation1 [shape = 'u32[144,128]{1,0:T(1,128)}', space=vmem, size = 0x12000, scoped, tag = 'internal scratch']
  #allocation2 [shape = 'f32[1,4]{1,0:T(1,128)}', space=vmem, size = 0x200, scoped, tag = 'scratch operand']
  #allocation3 [shape = 'f32[1,4]{1,0:T(1,128)}', space=vmem, size = 0x200, scoped, tag = 'scratch operand']
  #allocation4 [shape = 'f32[1,1]{1,0:T(1,128)}', space=vmem, size = 0x200, scoped, tag = 'scratch operand']
  #allocation5 [shape = 'bf16[8,8]{1,0:T(8,128)(2,1)}', space=vmem, size = 0x800, scoped, tag = 'scratch operand']
  %s0 = inlined_call_operand.hbm [shape: bf16[16,32], index: 0, kind: input, shape index: {}]
  %s1 = inlined_call_operand.vmem [shape: bf16[4,32], index: 1, kind: input, shape index: {}]
  %s2 = inlined_call_operand.hbm [shape: f32[16,128], index: 2, kind: output, shape index: {0}]
  %s3 = inlined_call_operand.hbm [shape: f32[1,1], index: 3, kind: output, shape index: {1}]
  %s4 = inlined_call_operand.hbm [shape: f32[1,1], index: 4, kind: output, shape index: {2}]
  %s5 = inlined_call_operand.hbm [shape: f32[1,4], index: 5, kind: output, shape index: {3}]
  %6 = xla_tuple %s2, %s3, %s4, %s5
  %s7 = sld [smem:[#allocation0]]
  $region77: #{tpu_custom_call.1} parent=0
    _
  %s9 = ssub.s32 1, %s7
  %s10 = scalar_select 0, %s9, %s7
  $region1: #{tpu_custom_call.1} parent=0
    #allocation6 [shape = 'u8[4096]{0}', space=vmem, size = 0x1000, scoped, tag = 'input window, operand 0']
    #allocation7 [shape = 's32[2]{0}', space=sflag, size = 0x8, scoped, tag = 'scoped memory for tpu_custom_call.1']
    #allocation8 [shape = 's32[2]{0}', space=sflag, size = 0x8, scoped, tag = 'scoped memory for tpu_custom_call.1']
    #allocation9 [shape = 'u8[8192]{0}', space=vmem, size = 0x2000, scoped, tag = 'output window, operand 0']
    #allocation10 [shape = 'u8[512]{0}', space=vmem, size = 0x400, scoped, tag = 'output window, operand 1, single buffered']
    #allocation11 [shape = 's32[1]{0}', space=sflag, size = 0x4, scoped, tag = 'scoped memory for tpu_custom_call.1']
    #allocation12 [shape = 'u8[512]{0}', space=vmem, size = 0x400, scoped, tag = 'output window, operand 2, single buffered']
    #allocation13 [shape = 'u8[512]{0}', space=vmem, size = 0x400, scoped, tag = 'output window, operand 3, single buffered']
    #allocation14 [shape = 's32[1]{0}', space=sflag, size = 0x4, scoped, tag = 'scoped memory for tpu_custom_call.1']
    %11 = vsyncpa [#allocation7], 0
    %s12 = scalar_lea.sflag [#allocation7], 1
    %13 = vsyncpa %s12, 0
    %14 = vsyncpa [#allocation8], 0
    %s15 = scalar_lea.sflag [#allocation8], 1
    %16 = vsyncpa %s15, 0
    %17 = vsyncpa [#allocation11], 0
    %18 = vsyncpa [#allocation14], 0
    loop: start=0, step=1, limit=4
    $region2: #{tpu_custom_call.1} parent=1 // loop_pre_header
      _
    $region3: #{tpu_custom_call.1} parent=1 // loop_header
      %s20 = sphi 0, %s24
      %p21 = scmp.ge.s32.totalorder %s20, 4
      %s30 = sphi 0, %s32
      %s33 = sphi 0, %s30
      %s34 = sphi 0, %s33
      %s50 = sphi 0, %s34
      %s54 = sphi 0, %s54
      %s56 = sphi 0, %s54
      %s57 = sphi 0, %s56
      %s71 = sphi 0, %s57
      %s77 = sphi 0, %s79
      %s80 = sphi 0, %s77
      %s81 = sphi 0, %s80
      %s97 = sphi 0, %s81
      %s101 = sphi 0, %s101
      %s103 = sphi 0, %s101
      %s104 = sphi 0, %s103
      %s118 = sphi 0, %s104
      %s122 = sphi 0, %s122
      %s124 = sphi 0, %s122
      %s125 = sphi 0, %s124
      %s139 = sphi 0, %s125
      %s143 = sphi 0, %s143
      %s145 = sphi 0, %s143
      %s146 = sphi 0, %s145
      %s160 = sphi 0, %s146
    $region4: #{tpu_custom_call.1} parent=1 // loop_header_branch
      %23 = sbr.rel (%p21) target = $region8
    $region5: #{tpu_custom_call.1} parent=1 // loop_body
      %s25 = ssub.s32 %s20, 1
      %s26 = ssub.s32 %s20, 2
      %s27 = sadd.s32 %s20, 1
      %s28 = ssub.s32 %s20, %s27
      %p29 = scmp.eq.s32.totalorder %s28, 0
      %s31 = sadd.s32 %s30, 1
      %s32 = scalar_select %p29, %s30, %s31
      %p35 = pneg %p29
      %p36 = scmp.eq.s32.totalorder %s20, 1
      %p37 = por %p35, %p36
      %p38 = scmp.ne.s32.totalorder %s30, %s33
      %p39 = scmp.eq.s32.totalorder %s20, 0
      %p40 = por %p38, %p39
      %p41 = scmp.ne.s32.totalorder %s30, %s33
      %p42 = scmp.eq.s32.totalorder %s25, 1
      %p43 = por %p41, %p42
      %p44 = scmp.ne.s32.totalorder %s33, %s34
      %p45 = scmp.eq.s32.totalorder %s25, 0
      %p46 = por %p44, %p45
      %p47 = scmp.ne.s32.totalorder %s33, %s34
      %p48 = scmp.eq.s32.totalorder %s26, 1
      %p49 = por %p47, %p48
      %p51 = scmp.ne.s32.totalorder %s34, %s50
      %p52 = scmp.eq.s32.totalorder %s26, 0
      %p53 = por %p51, %p52
      %s55 = sadd.s32 %s54, 1
      %p58 = scmp.eq.s32.totalorder %s20, 1
      %p59 = scmp.ne.s32.totalorder %s54, %s56
      %p60 = scmp.eq.s32.totalorder %s20, 0
      %p61 = por %p59, %p60
      %p62 = scmp.ne.s32.totalorder %s54, %s56
      %p63 = scmp.eq.s32.totalorder %s25, 1
      %p64 = por %p62, %p63
      %p65 = scmp.ne.s32.totalorder %s56, %s57
      %p66 = scmp.eq.s32.totalorder %s25, 0
      %p67 = por %p65, %p66
      %p68 = scmp.ne.s32.totalorder %s56, %s57
      %p69 = scmp.eq.s32.totalorder %s26, 1
      %p70 = por %p68, %p69
      %p72 = scmp.ne.s32.totalorder %s57, %s71
      %p73 = scmp.eq.s32.totalorder %s26, 0
      %p74 = por %p72, %p73
      %s75 = ssub.s32 %s20, %s27
      %p76 = scmp.eq.s32.totalorder %s75, 0
      %s78 = sadd.s32 %s77, 1
      %s79 = scalar_select %p76, %s77, %s78
      %p82 = pneg %p76
      %p83 = scmp.eq.s32.totalorder %s20, 1
      %p84 = por %p82, %p83
      %p85 = scmp.ne.s32.totalorder %s77, %s80
      %p86 = scmp.eq.s32.totalorder %s20, 0
      %p87 = por %p85, %p86
      %p88 = scmp.ne.s32.totalorder %s77, %s80
      %p89 = scmp.eq.s32.totalorder %s25, 1
      %p90 = por %p88, %p89
      %p91 = scmp.ne.s32.totalorder %s80, %s81
      %p92 = scmp.eq.s32.totalorder %s25, 0
      %p93 = por %p91, %p92
      %p94 = scmp.ne.s32.totalorder %s80, %s81
      %p95 = scmp.eq.s32.totalorder %s26, 1
      %p96 = por %p94, %p95
      %p98 = scmp.ne.s32.totalorder %s81, %s97
      %p99 = scmp.eq.s32.totalorder %s26, 0
      %p100 = por %p98, %p99
      %s102 = sadd.s32 %s101, 1
      %p105 = scmp.eq.s32.totalorder %s20, 1
      %p106 = scmp.ne.s32.totalorder %s101, %s103
      %p107 = scmp.eq.s32.totalorder %s20, 0
      %p108 = por %p106, %p107
      %p109 = scmp.ne.s32.totalorder %s101, %s103
      %p110 = scmp.eq.s32.totalorder %s25, 1
      %p111 = por %p109, %p110
      %p112 = scmp.ne.s32.totalorder %s103, %s104
      %p113 = scmp.eq.s32.totalorder %s25, 0
      %p114 = por %p112, %p113
      %p115 = scmp.ne.s32.totalorder %s103, %s104
      %p116 = scmp.eq.s32.totalorder %s26, 1
      %p117 = por %p115, %p116
      %p119 = scmp.ne.s32.totalorder %s104, %s118
      %p120 = scmp.eq.s32.totalorder %s26, 0
      %p121 = por %p119, %p120
      %s123 = sadd.s32 %s122, 1
      %p126 = scmp.eq.s32.totalorder %s20, 1
      %p127 = scmp.ne.s32.totalorder %s122, %s124
      %p128 = scmp.eq.s32.totalorder %s20, 0
      %p129 = por %p127, %p128
      %p130 = scmp.ne.s32.totalorder %s122, %s124
      %p131 = scmp.eq.s32.totalorder %s25, 1
      %p132 = por %p130, %p131
      %p133 = scmp.ne.s32.totalorder %s124, %s125
      %p134 = scmp.eq.s32.totalorder %s25, 0
      %p135 = por %p133, %p134
      %p136 = scmp.ne.s32.totalorder %s124, %s125
      %p137 = scmp.eq.s32.totalorder %s26, 1
      %p138 = por %p136, %p137
      %p140 = scmp.ne.s32.totalorder %s125, %s139
      %p141 = scmp.eq.s32.totalorder %s26, 0
      %p142 = por %p140, %p141
      %s144 = sadd.s32 %s143, 1
      %p147 = scmp.eq.s32.totalorder %s20, 1
      %p148 = scmp.ne.s32.totalorder %s143, %s145
      %p149 = scmp.eq.s32.totalorder %s20, 0
      %p150 = por %p148, %p149
      %p151 = scmp.ne.s32.totalorder %s143, %s145
      %p152 = scmp.eq.s32.totalorder %s25, 1
      %p153 = por %p151, %p152
      %p154 = scmp.ne.s32.totalorder %s145, %s146
      %p155 = scmp.eq.s32.totalorder %s25, 0
      %p156 = por %p154, %p155
      %p157 = scmp.ne.s32.totalorder %s145, %s146
      %p158 = scmp.eq.s32.totalorder %s26, 1
      %p159 = por %p157, %p158
      %p161 = scmp.ne.s32.totalorder %s146, %s160
      %p162 = scmp.eq.s32.totalorder %s26, 0
      %p163 = por %p161, %p162
      %p164 = scmp.le.s32.totalorder 1, %s20
      %p165 = scmp.lt.s32.totalorder %s20, 3
      %p166 = pnand %p164, %p165
      %p167 = pneg %p166
      // Predicated region
      $region9: #{tpu_custom_call.1} parent=5 // pred_check
        _
      $region10: #{tpu_custom_call.1} parent=5 // pred_check_branch
        %169 = sbr.rel (%p166) target = $region12
      $region11: #{tpu_custom_call.1} parent=5 // pred_region
        %s170 = ssub.s32 %s20, 1
        // Predicated region
        $region13: #{tpu_custom_call.1} parent=11 // pred_check
          %p171 = pneg %p67
        $region14: #{tpu_custom_call.1} parent=11 // pred_check_branch
          %173 = sbr.rel (%p171) target = $region16
        $region15: #{tpu_custom_call.1} parent=11 // pred_region
          _
        $region16: #{tpu_custom_call.1} parent=11 // pred_fallthru
          _
      $region12: #{tpu_custom_call.1} parent=5 // pred_fallthru
        _
      %p174 = scmp.lt.s32.totalorder %s20, 2
      // Predicated region
      $region17: #{tpu_custom_call.1} parent=5 // pred_check
        %p175 = pneg %p174
      $region18: #{tpu_custom_call.1} parent=5 // pred_check_branch
        %177 = sbr.rel (%p175) target = $region20
      $region19: #{tpu_custom_call.1} parent=5 // pred_region
        // Predicated region
        $region21: #{tpu_custom_call.1} parent=19 // pred_check
          %p178 = pneg %p40
        $region22: #{tpu_custom_call.1} parent=19 // pred_check_branch
          %180 = sbr.rel (%p178) target = $region24
        $region23: #{tpu_custom_call.1} parent=19 // pred_region
          %s181 = sand.u32 %s30, 1
          %s182 = scalar_lea.sflag [#allocation7], %s181
          %s183 = sand.u32 %s30, 1
          %s184 = smul.addr %s183, 4
          %s185 = scalar_lea.vmem [#allocation6], %s184
          %s187 = ssub.s32 64, 64
          %188 = vsyncadd %s182, %s187
          %s189 = smul.addr %s20, 64
          %s190 = scalar_lea.hbm %s0, %s189
          %s192 = sshll.u32 %s185, 4
          %s193 = int_to_ptr.vmem [resolvable:$true] %s192
          %195 = dma.hbm_to_vmem [thread:$0]  %s190, 64, %s193, %s182
        $region24: #{tpu_custom_call.1} parent=19 // pred_fallthru
          _
      $region20: #{tpu_custom_call.1} parent=5 // pred_fallthru
        _
      %p196 = scmp.le.s32.totalorder 1, %s20
      %p197 = scmp.lt.s32.totalorder %s20, 3
      %p198 = pnand %p196, %p197
      %p199 = pneg %p198
      // Predicated region
      $region25: #{tpu_custom_call.1} parent=5 // pred_check
        _
      $region26: #{tpu_custom_call.1} parent=5 // pred_check_branch
        %201 = sbr.rel (%p198) target = $region28
      $region27: #{tpu_custom_call.1} parent=5 // pred_region
        %s202 = ssub.s32 %s20, 1
        %s203 = sand.u32 %s33, 1
        %s204 = scalar_lea.sflag [#allocation7], %s203
        %s205 = sand.u32 %s33, 1
        %s206 = smul.addr %s205, 4
        %s207 = scalar_lea.vmem [#allocation6], %s206
        // Predicated region
        $region29: #{tpu_custom_call.1} parent=27 // pred_check
          %p208 = pneg %p46
        $region30: #{tpu_custom_call.1} parent=27 // pred_check_branch
          %210 = sbr.rel (%p208) target = $region32
        $region31: #{tpu_custom_call.1} parent=27 // pred_region
          %211 = dma.done %s204, 64
        $region32: #{tpu_custom_call.1} parent=27 // pred_fallthru
          _
        %s212 = sand.u32 %s33, 1
        %s213 = scalar_lea.sflag [#allocation7], %s212
        %s214 = sand.u32 %s33, 1
        %s215 = smul.addr %s214, 4
        %s216 = scalar_lea.vmem [#allocation6], %s215
        %p217 = pneg %p46
        %p218 = pneg %p43
        %p219 = pneg %p67
        %p220 = pneg %p64
        %p221 = pneg %p93
        %p222 = pneg %p90
        %s223 = sand.u32 %s80, 1
        %s224 = scalar_lea.sflag [#allocation8], %s223
        %s225 = sand.u32 %s80, 1
        %s226 = smul.addr %s225, 8
        %s227 = scalar_lea.vmem [#allocation9], %s226
        %p228 = pneg %p114
        %p229 = pneg %p111
        %p230 = pneg %p135
        %p231 = pneg %p132
        %p232 = pneg %p156
        %p233 = pneg %p153
        %p235 = scmp.eq.s32.totalorder %s25, 0
        // Predicated region
        $region33: #{tpu_custom_call.1} parent=27 // pred_check
          %p236 = pneg %p235
        $region34: #{tpu_custom_call.1} parent=27 // pred_check_branch
          %238 = sbr.rel (%p236) target = $region36
        $region35: #{tpu_custom_call.1} parent=27 // pred_region
          %vm239 = vcmask 24576
          %240 = vst.msk [vmem:[#allocation2] sm:$0x1] %vm239, 0.0
          %241 = vst.msk [vmem:[#allocation3] sm:$0x1] %vm239, 0.0
          %vm242 = vcmask 0
          %243 = vst.msk [vmem:[#allocation4] sm:$0x1] %vm242, 0.0
          %v244 = vlaneseq
          %v245 = vshrl.u32 %v244, 7
          %v246 = vlaneseq
          %v247 = vand.u32 %v246, 127
          %vm248 = vcmp.ge.s32.totalorder %v245, %v247
          %v249 = vsel %vm248, 1, 0
          %v250 = vcvt.s32.f32 %v249
          %v251 = vpack.c.bf16 %v250, %v250
          %vm252 = vcmask 60416
          %253 = vst.msk [vmem:[#allocation5] sm:$0xf] %vm252, %v251
        $region36: #{tpu_custom_call.1} parent=27 // pred_fallthru
          _
        %v254 = vld [vmem:[%s207] sm:$0xf]
        %v255 = vld [vmem:[%s1] sm:$0x3]
        %v256 = vlaneseq
        %v257 = vshrl.u32 %v256, 7
        %s258 = smul.u32 %s25, 8
        %v259 = vstv %s258
        %v260 = vadd.s32 %v257, %v259
        %vm261 = vcmp.lt.s32.totalorder %v260, 16
        %v262 = vsel %vm261, 1, 0
        %v263 = vcvt.s32.f32 %v262
        %vm264 = vcmask 261120
        %v266 = vsel %vm264, %v254, 0
        %v269 = vsel %vm264, %v255, 0
        %271 = vmatprep.subr.bf16.mxu0 0
        %272 = vmatpush1.bf16.xpose.msra.mxu0 %v269
        %273 = vmatprep.subr.bf16.mxu0 0
        %274 = vmatpush1.bf16.xpose.msra.mxu0 0
        %275 = vmatprep.subr.bf16.mxu0 0
        %276 = vmatpush1.bf16.xpose.msra.mxu0 0
        %277 = vmatprep.subr.bf16.mxu0 0
        %278 = vmatpush1.bf16.xpose.msra.mxu0 0
        %279 = vmatprep.subr.bf16.mxu0 0
        %280 = vmatpush1.bf16.xpose.msra.mxu0 0
        %281 = vmatprep.subr.bf16.mxu0 0
        %282 = vmatpush1.bf16.xpose.msra.mxu0 0
        %283 = vmatprep.subr.bf16.mxu0 0
        %284 = vmatpush1.bf16.xpose.msra.mxu0 0
        %285 = vmatprep.subr.bf16.mxu0 0
        %286 = vmatpush1.bf16.xpose.msra.mxu0 0
        %287 = vmatprep.subr.bf16.mxu0 0
        %288 = vmatpush1.bf16.xpose.msra.mxu0 0
        %289 = vmatprep.subr.bf16.mxu0 0
        %290 = vmatpush1.bf16.xpose.msra.mxu0 0
        %291 = vmatprep.subr.bf16.mxu0 0
        %292 = vmatpush1.bf16.xpose.msra.mxu0 0
        %293 = vmatprep.subr.bf16.mxu0 0
        %294 = vmatpush1.bf16.xpose.msra.mxu0 0
        %295 = vmatprep.subr.bf16.mxu0 0
        %296 = vmatpush1.bf16.xpose.msra.mxu0 0
        %297 = vmatprep.subr.bf16.mxu0 0
        %298 = vmatpush1.bf16.xpose.msra.mxu0 0
        %299 = vmatprep.subr.bf16.mxu0 0
        %300 = vmatpush1.bf16.xpose.msra.mxu0 0
        %301 = vmatprep.subr.bf16.mxu0 0
        %302 = vmatpush1.bf16.xpose.msra.mxu0 0
        %303 = vmatprep.mubr.bf16.mxu0 0
        %304 = vmatmul.mubr.bf16.gmra.mrb[0].mxu0 %v266
        %v305 = vpop.f32.mrb[0].mxu0
        %v306 = vadd.f32 0.0, %v305
        %v307 = vpop.f32.mrb[0].mxu0
        %v308 = vpop.f32.mrb[0].mxu0
        %v309 = vpop.f32.mrb[0].mxu0
        %310 = vdwg.mxu0
        %vm311 = vcmask 31744
        %v312 = vsel %vm311, %v306, -inf
        %313 = vmax.xlane.f32.xlu0 %v312
        %v314 = vpop.xlane.xlu0 %313
        %v315 = vsub.f32 %v306, %v314
        %v316 = vmul.f32 %v315, 1.442695
        %v317 = vpow.pop %v316
        %v318 = vsel %vm311, %v317, 0.0
        %319 = vadd.xlane.f32.xlu0 %v318
        %v320 = vpop.xlane.xlu0 %319
        %v321 = vrcp.pop %v320
        %v322 = vmul.f32 %v317, %v321
        %v323 = vlog2.pop %v320
        %v324 = vmul.f32 %v323, 0.6931472
        %v325 = vsub.f32 %v315, %v324
        %v326 = vmul.f32 %v322, %v325
        %v327 = vsel %vm311, %v326, 0.0
        %328 = vadd.xlane.f32.xlu0 %v327
        %v329 = vpop.xlane.xlu0 %328
        %v330 = vsub.f32 0.0, %v329
        %v331 = vld [vmem:[#allocation4] sm:$0x1]
        %v332 = vmul.f32 %v330, %v263
        %v333 = vrot.slane %v332, 4
        %v334 = vadd.f32 %v332, %v333
        %v335 = vrot.slane %v334, 2
        %v336 = vadd.f32 %v334, %v335
        %v337 = vrot.slane %v336, 1
        %v338 = vadd.f32 %v336, %v337
        %v339 = vadd.f32 %v331, %v338
        %vm340 = vcmask 0
        %341 = vst.msk [vmem:[#allocation4] sm:$0x1] %vm340, %v339
        %v342 = vlaneseq
        %v343 = vand.u32 %v342, 127
        %vm344 = vcmp.eq.f32.partialorder %v306, %v314
        %v345 = vsel %vm344, %v343, 4
        %v346 = vsel %vm311, %v345, 2147483647
        %v347 = vand.u32 %v346, 65535
        %v348 = vshra.s32 %v346, 16
        %v349 = vcvt.s32.f32 %v347
        %v350 = vcvt.s32.f32 %v348
        %351 = vmin.xlane.f32.xlu0 %v350
        %v352 = vpop.xlane.xlu0 %351
        %vm353 = vcmp.eq.f32.partialorder %v350, %v352
        %v354 = vsel %vm353, %v349, inf
        %355 = vmin.xlane.f32.xlu0 %v354
        %v356 = vpop.xlane.xlu0 %355
        %v357 = vcvt.f32.s32 %v356
        %v358 = vcvt.f32.s32 %v352
        %v359 = vshll.u32 %v358, 16
        %v360 = vadd.s32 %v359, %v357
        %vm361 = vcmp.eq.s32.totalorder %v343, %v360
        %v362 = vsel %vm361, 1, 0
        %v363 = vcvt.s32.f32 %v362
        %v364 = vmul.f32 %v363, %v263
        %v365 = vld [vmem:[#allocation3] sm:$0x1]
        %v366 = vmul.f32 %v322, %v263
        %v367 = vsel %vm311, %v366, 0.0
        %v368 = vrot.slane %v367, 4
        %v369 = vadd.f32 %v367, %v368
        %v370 = vrot.slane %v369, 2
        %v371 = vadd.f32 %v369, %v370
        %v372 = vrot.slane %v371, 1
        %v373 = vadd.f32 %v371, %v372
        %v374 = vadd.f32 %v365, %v373
        %vm375 = vcmask 24576
        %376 = vst.msk [vmem:[#allocation3] sm:$0x1] %vm375, %v374
        %v377 = vsel %vm311, %v364, 0.0
        %v378 = vrot.slane %v377, 4
        %v379 = vadd.f32 %v377, %v378
        %v380 = vrot.slane %v379, 2
        %v381 = vadd.f32 %v379, %v380
        %v382 = vrot.slane %v381, 1
        %v383 = vadd.f32 %v381, %v382
        %v384 = vld [vmem:[#allocation2] sm:$0x1]
        %v385 = vadd.f32 %v384, %v383
        %386 = vst.msk [vmem:[#allocation2] sm:$0x1] %vm375, %v385
        %v387 = vmul.f32 %v322, %v364
        %v388 = vsel %vm311, %v387, 0.0
        %389 = vadd.xlane.f32.xlu0 %v388
        %v390 = vpop.xlane.xlu0 %389
        %v391 = vld [vmem:[#allocation5] sm:$0xf]
        %v392 = vpack.c.bf16 %v364, %v364
        %v394 = vlaneseq
        %v395 = vshrl.u32 %v394, 7
        %v396 = vsub.s32 0, %v395
        %v397 = vrot.slane %v384, %v396
        %vm399 = vcmask 64512
        %v401 = vsel %vm399, %v391, 0
        %vm403 = vcmask 1043456
        %v405 = vsel %vm403, %v392, 0
        %407 = vmatprep.subr.bf16.mxu0 0
        %408 = vmatpush1.bf16.msra.mxu0 %v405
        %409 = vmatprep.subr.bf16.mxu0 0
        %410 = vmatpush1.bf16.msra.mxu0 0
        %411 = vmatprep.subr.bf16.mxu0 0
        %412 = vmatpush1.bf16.msra.mxu0 0
        %413 = vmatprep.subr.bf16.mxu0 0
        %414 = vmatpush1.bf16.msra.mxu0 0
        %415 = vmatprep.subr.bf16.mxu0 0
        %416 = vmatpush1.bf16.msra.mxu0 0
        %417 = vmatprep.subr.bf16.mxu0 0
        %418 = vmatpush1.bf16.msra.mxu0 0
        %419 = vmatprep.subr.bf16.mxu0 0
        %420 = vmatpush1.bf16.msra.mxu0 0
        %421 = vmatprep.subr.bf16.mxu0 0
        %422 = vmatpush1.bf16.msra.mxu0 0
        %423 = vmatprep.subr.bf16.mxu0 0
        %424 = vmatpush1.bf16.msra.mxu0 0
        %425 = vmatprep.subr.bf16.mxu0 0
        %426 = vmatpush1.bf16.msra.mxu0 0
        %427 = vmatprep.subr.bf16.mxu0 0
        %428 = vmatpush1.bf16.msra.mxu0 0
        %429 = vmatprep.subr.bf16.mxu0 0
        %430 = vmatpush1.bf16.msra.mxu0 0
        %431 = vmatprep.subr.bf16.mxu0 0
        %432 = vmatpush1.bf16.msra.mxu0 0
        %433 = vmatprep.subr.bf16.mxu0 0
        %434 = vmatpush1.bf16.msra.mxu0 0
        %435 = vmatprep.subr.bf16.mxu0 0
        %436 = vmatpush1.bf16.msra.mxu0 0
        %437 = vmatprep.subr.bf16.mxu0 0
        %438 = vmatpush1.bf16.msra.mxu0 0
        %439 = vmatprep.mubr.bf16.mxu0 0
        %440 = vmatmul.mubr.bf16.gmra.mrb[0].mxu0 %v401
        %v441 = vpop.f32.mrb[0].mxu0
        %v442 = vadd.f32 %v397, %v441
        %v443 = vpop.f32.mrb[0].mxu0
        %v444 = vpop.f32.mrb[0].mxu0
        %v445 = vpop.f32.mrb[0].mxu0
        %446 = vdwg.mxu0
        %v447 = vsub.f32 %v442, 1.0
        %vm448 = vcmp.lt.f32.partialorder %v447, 4.0
        %v449 = vsel %vm448, 1, 0
        %v450 = vcvt.s32.f32 %v449
        %v451 = vmul.f32 %v364, %v450
        %v452 = vmul.f32 %v447, %v451
        %v453 = vsel %vm311, %v452, 0.0
        %454 = vadd.xlane.f32.xlu0 %v453
        %v455 = vpop.xlane.xlu0 %454
        %456 = vst [vmem:[%s227] sm:$0xff] 0.0
        %457 = vst.msk [vmem:[%s227] sm:$0xff] %vm311, %v451
        %vm458 = vcmask 39968
        %459 = vst.msk [vmem:[%s227] sm:$0xff] %vm458, %v455
        %vm460 = vcmask 48168
        %461 = vst.msk [vmem:[%s227] sm:$0xff] %vm460, %v390
        %p462 = scmp.eq.s32.totalorder %s25, 1
        // Predicated region
        $region37: #{tpu_custom_call.1} parent=27 // pred_check
          %p463 = pneg %p462
        $region38: #{tpu_custom_call.1} parent=27 // pred_check_branch
          %465 = sbr.rel (%p463) target = $region40
        $region39: #{tpu_custom_call.1} parent=27 // pred_region
          %v466 = vld [vmem:[#allocation2] sm:$0x1]
          %v467 = vld [vmem:[#allocation3] sm:$0x1]
          %v468 = vmul.f32 %v467, 0.0625
          %v469 = vmul.f32 %v466, 0.0625
          %v470 = vmul.f32 %v468, %v469
          %v471 = vsel %vm375, %v470, 0.0
          %472 = vadd.xlane.f32.xlu0 %v471
          %v473 = vpop.xlane.xlu0 %472
          %v474 = vmul.f32 %v473, 4.0
          %475 = vst.msk [vmem:[#allocation10] sm:$0x1] %vm340, %v474
          %v476 = vld [vmem:[#allocation4] sm:$0x1]
          %v477 = vmul.f32 %v476, 0.0625
          %478 = vst.msk [vmem:[#allocation12] sm:$0x1] %vm340, %v477
          %479 = vst.msk [vmem:[#allocation13] sm:$0x1] %vm375, %v466
        $region40: #{tpu_custom_call.1} parent=27 // pred_fallthru
          _
        %s480 = sand.u32 %s80, 1
        %s481 = scalar_lea.sflag [#allocation8], %s480
        %s482 = sand.u32 %s80, 1
        %s483 = smul.addr %s482, 8
        %s484 = scalar_lea.vmem [#allocation9], %s483
        // Predicated region
        $region41: #{tpu_custom_call.1} parent=27 // pred_check
          %p485 = pneg %p90
        $region42: #{tpu_custom_call.1} parent=27 // pred_check_branch
          %487 = sbr.rel (%p485) target = $region44
        $region43: #{tpu_custom_call.1} parent=27 // pred_region
          %s489 = ssub.s32 128, 128
          %490 = vsyncadd %s481, %s489
          %s491 = smul.addr %s25, 128
          %s492 = scalar_lea.hbm %s2, %s491
          %s494 = sshll.u32 %s484, 4
          %s495 = int_to_ptr.vmem [resolvable:$true] %s494
          %497 = dma.vmem_to_hbm [thread:$0]  %s495, 128, %s492, %s481
        $region44: #{tpu_custom_call.1} parent=27 // pred_fallthru
          _
        // Predicated region
        $region45: #{tpu_custom_call.1} parent=27 // pred_check
          %p498 = pneg %p111
        $region46: #{tpu_custom_call.1} parent=27 // pred_check_branch
          %500 = sbr.rel (%p498) target = $region48
        $region47: #{tpu_custom_call.1} parent=27 // pred_region
          %s502 = ssub.s32 16, 16
          %503 = vsyncadd [#allocation11], %s502
          %s505 = sshll.u32 [#allocation10], 4
          %s506 = int_to_ptr.vmem [resolvable:$true] %s505
          %508 = dma.vmem_to_hbm [thread:$0]  %s506, 16, %s3, [#allocation11]
        $region48: #{tpu_custom_call.1} parent=27 // pred_fallthru
          _
        // Predicated region
        $region49: #{tpu_custom_call.1} parent=27 // pred_check
          %p509 = pneg %p132
        $region50: #{tpu_custom_call.1} parent=27 // pred_check_branch
          %511 = sbr.rel (%p509) target = $region52
        $region51: #{tpu_custom_call.1} parent=27 // pred_region
          %s513 = ssub.s32 16, 16
          %514 = vsyncadd [#allocation11], %s513
          %s516 = sshll.u32 [#allocation12], 4
          %s517 = int_to_ptr.vmem [resolvable:$true] %s516
          %519 = dma.vmem_to_hbm [thread:$0]  %s517, 16, %s4, [#allocation11]
        $region52: #{tpu_custom_call.1} parent=27 // pred_fallthru
          _
        // Predicated region
        $region53: #{tpu_custom_call.1} parent=27 // pred_check
          %p520 = pneg %p153
        $region54: #{tpu_custom_call.1} parent=27 // pred_check_branch
          %522 = sbr.rel (%p520) target = $region56
        $region55: #{tpu_custom_call.1} parent=27 // pred_region
          %s524 = ssub.s32 16, 16
          %525 = vsyncadd [#allocation14], %s524
          %s527 = sshll.u32 [#allocation13], 4
          %s528 = int_to_ptr.vmem [resolvable:$true] %s527
          %530 = dma.vmem_to_hbm [thread:$0]  %s528, 16, %s5, [#allocation14]
        $region56: #{tpu_custom_call.1} parent=27 // pred_fallthru
          _
        // Predicated region
        $region57: #{tpu_custom_call.1} parent=27 // pred_check
          %p531 = pneg %p111
        $region58: #{tpu_custom_call.1} parent=27 // pred_check_branch
          %533 = sbr.rel (%p531) target = $region60
        $region59: #{tpu_custom_call.1} parent=27 // pred_region
          %534 = dma.done [#allocation11], 16
        $region60: #{tpu_custom_call.1} parent=27 // pred_fallthru
          _
        // Predicated region
        $region61: #{tpu_custom_call.1} parent=27 // pred_check
          %p535 = pneg %p132
        $region62: #{tpu_custom_call.1} parent=27 // pred_check_branch
          %537 = sbr.rel (%p535) target = $region64
        $region63: #{tpu_custom_call.1} parent=27 // pred_region
          %538 = dma.done [#allocation11], 16
        $region64: #{tpu_custom_call.1} parent=27 // pred_fallthru
          _
        // Predicated region
        $region65: #{tpu_custom_call.1} parent=27 // pred_check
          %p539 = pneg %p153
        $region66: #{tpu_custom_call.1} parent=27 // pred_check_branch
          %541 = sbr.rel (%p539) target = $region68
        $region67: #{tpu_custom_call.1} parent=27 // pred_region
          %542 = dma.done [#allocation14], 16
        $region68: #{tpu_custom_call.1} parent=27 // pred_fallthru
          _
      $region28: #{tpu_custom_call.1} parent=5 // pred_fallthru
        _
      %p543 = scmp.le.s32.totalorder 2, %s20
      // Predicated region
      $region69: #{tpu_custom_call.1} parent=5 // pred_check
        %p544 = pneg %p543
      $region70: #{tpu_custom_call.1} parent=5 // pred_check_branch
        %546 = sbr.rel (%p544) target = $region72
      $region71: #{tpu_custom_call.1} parent=5 // pred_region
        %s547 = ssub.s32 %s20, 2
        // Predicated region
        $region73: #{tpu_custom_call.1} parent=71 // pred_check
          %p548 = pneg %p96
        $region74: #{tpu_custom_call.1} parent=71 // pred_check_branch
          %550 = sbr.rel (%p548) target = $region76
        $region75: #{tpu_custom_call.1} parent=71 // pred_region
          %s551 = sand.u32 %s81, 1
          %s552 = scalar_lea.sflag [#allocation8], %s551
          %s553 = sand.u32 %s81, 1
          %s554 = smul.addr %s553, 8
          %s555 = scalar_lea.vmem [#allocation9], %s554
          %556 = dma.done %s552, 128
        $region76: #{tpu_custom_call.1} parent=71 // pred_fallthru
          _
      $region72: #{tpu_custom_call.1} parent=5 // pred_fallthru
        _
    $region6: #{tpu_custom_call.1} parent=1 // loop_footer
      %s24 = sadd.s32 1, %s20
    $region7: #{tpu_custom_call.1} parent=1 // loop_footer_branch
      %19 = sbr.rel target = $region3
    $region8: #{tpu_custom_call.1} parent=1 // loop_exit
      _
    %557 = vsyncpa [#allocation7], 1
    %s558 = scalar_lea.sflag [#allocation7], 1
    %559 = vsyncpa %s558, 1
    %560 = vsyncpa [#allocation8], 1
    %s561 = scalar_lea.sflag [#allocation8], 1
    %562 = vsyncpa %s561, 1
    %563 = vsyncpa [#allocation11], 1
    %564 = vsyncpa [#allocation14], 1

</llo_original>
